<compile_context>
chip_gen: v7x
topology: tpu7x:2x2x1
jax: 0.10.0
libtpu: 0.0.40
codegen_flags: <defaults>
</compile_context>

<pallas_src>
import jax
import jax.numpy as jnp
from jax.experimental import pallas as pl
from jax.experimental.pallas import tpu as pltpu

_LANE = 128


def weighted_residual_kernel(x_ref, sx_ref, wb_ref, ws_ref, o_ref):
    # x_ref : (bt, in_dim)
    # sx_ref: (bt, to, in_dim)
    # wb_ref, ws_ref: (to, in_dim)
    # o_ref : (bt, to, in_dim)
    x = x_ref[...].astype(jnp.float32)
    silu = x * jax.nn.sigmoid(x)                      # guarded logistic (EUP), f32 math
    wb = wb_ref[...].astype(jnp.float32)
    ws = ws_ref[...].astype(jnp.float32)
    sx = sx_ref[...].astype(jnp.float32)
    out = wb[None, :, :] * silu[:, None, :] + ws[None, :, :] * sx
    o_ref[...] = out.astype(o_ref.dtype)


def _pad_to(n, m):
    return ((n + m - 1) // m) * m


def _sublane_mult(itemsize):
    # f32 -> 8, bf16 -> 16, int8/fp8 -> 32 (packed-sublane block boundaries)
    return max(8, 32 // max(1, itemsize))


def _default_target_tile_bytes():
    # ~VMEM/10 so double-buffered sx+out (~4 tiles) stays well inside the budget:
    # v7x (64 MiB VMEM) -> ~6.4 MiB tiles; v5e/v6e (128 MiB) -> 12 MiB tiles.
    try:
        vmem = getattr(pltpu.get_tpu_info(), "vmem_capacity_bytes", 64 << 20)
    except Exception:
        vmem = 64 << 20
    return int(max(2 << 20, min(12 << 20, vmem // 10)))


def _choose_tiles(B, out_dim, in_dim, sx_itemsize, x_itemsize,
                  target_tile_bytes, min_grid_steps=4):
    sub_sx = _sublane_mult(sx_itemsize)
    sub_x = _sublane_mult(x_itemsize)
    lane_bytes = _pad_to(in_dim, _LANE) * sx_itemsize
    row_bytes = out_dim * lane_bytes                  # one (padded) batch row of sx

    if row_bytes * min(B, sub_x) > target_tile_bytes and out_dim > sub_sx:
        # Even a minimal batch block is too big: also tile out_dim (sublane axis).
        # TODO(synk): add an in_dim (lane) grid axis for pathologically large in_dim.
        bt = min(B, sub_x)
        to = target_tile_bytes // max(1, bt * lane_bytes)
        to = max(sub_sx, (to // sub_sx) * sub_sx)
        to = min(to, out_dim)
    else:
        to = out_dim
        bt = max(1, target_tile_bytes // max(1, row_bytes))
        bt = min(bt, B)
        # Keep >= min_grid_steps batch steps so both v7x cores get work and the
        # DMA-in / compute / DMA-out pipeline has something to overlap.
        bt = min(bt, max(1, pl.cdiv(B, min_grid_steps)))

    if bt < B:
        # x's block is (bt, in_dim): bt is its sublane dim -> keep it dtype-aligned.
        bt = max(sub_x, (bt // sub_x) * sub_x)
        bt = min(bt, B)
    return bt, to


def weighted_residual(x, sx, wb, ws, *, target_tile_bytes=None, min_grid_steps=4):
    B, in_dim = x.shape
    out_dim = sx.shape[1]
    assert sx.shape == (B, out_dim, in_dim)
    assert wb.shape == (out_dim, in_dim) and ws.shape == (out_dim, in_dim)

    if target_tile_bytes is None:
        target_tile_bytes = _default_target_tile_bytes()

    out_dtype = sx.dtype
    sx_item = jnp.dtype(sx.dtype).itemsize
    x_item = jnp.dtype(x.dtype).itemsize
    w_item = jnp.dtype(wb.dtype).itemsize
    out_item = jnp.dtype(out_dtype).itemsize

    bt, to = _choose_tiles(B, out_dim, in_dim, sx_item, x_item,
                           target_tile_bytes, min_grid_steps)
    grid = (pl.cdiv(B, bt), pl.cdiv(out_dim, to))

    # VMEM limit computed from actual padded, double-buffered tile usage
    # (never pinned to the chip's full physical VMEM).
    lane_pad = _pad_to(in_dim, _LANE)
    sx_tile = bt * _pad_to(to, _sublane_mult(sx_item)) * lane_pad * sx_item
    out_tile = bt * _pad_to(to, _sublane_mult(out_item)) * lane_pad * out_item
    x_tile = _pad_to(bt, _sublane_mult(x_item)) * lane_pad * x_item
    w_tile = _pad_to(to, _sublane_mult(w_item)) * lane_pad * w_item
    vmem_needed = 2 * (sx_tile + out_tile + x_tile + 2 * w_tile) + (2 << 20)
    vmem_limit = int(max(vmem_needed, 16 << 20))

    return pl.pallas_call(
        weighted_residual_kernel,
        out_shape=jax.ShapeDtypeStruct((B, out_dim, in_dim), out_dtype),
        grid=grid,
        in_specs=[
            pl.BlockSpec((bt, in_dim), lambda b, o: (b, 0)),           # x  (batch-tiled)
            pl.BlockSpec((bt, to, in_dim), lambda b, o: (b, o, 0)),    # sx (batch/out-tiled)
            pl.BlockSpec((to, in_dim), lambda b, o: (o, 0)),           # wb (resident per o-tile)
            pl.BlockSpec((to, in_dim), lambda b, o: (o, 0)),           # ws
        ],
        out_specs=pl.BlockSpec((bt, to, in_dim), lambda b, o: (b, o, 0)),
        compiler_params=pltpu.CompilerParams(
            dimension_semantics=("parallel", "parallel"),
            vmem_limit_bytes=vmem_limit,
        ),
    )(x, sx, wb, ws)


if __name__ == "__main__":
    # Small shapes consistent with the module's forward signature.
    B, in_dim, out_dim = 2, 32, 8
    residual_variance = 0.1

    key = jax.random.PRNGKey(0)
    kx, ksx, kwb = jax.random.split(key, 3)

    x = jax.random.normal(kx, (B, in_dim), dtype=jnp.float32)
    sx = jax.random.normal(ksx, (B, out_dim, in_dim), dtype=jnp.float32)

    # Deterministic parameter init matching nn.init.normal_(std=0.1) / ones_.
    wb = residual_variance * jax.random.normal(kwb, (out_dim, in_dim), dtype=jnp.float32)
    ws = jnp.ones((out_dim, in_dim), dtype=jnp.float32)

    out = weighted_residual(x, sx, wb, ws)
    out = jax.block_until_ready(out)

    # Pure-JAX reference check.
    ref = wb[None] * jax.nn.silu(x)[:, None, :] + ws[None] * sx
    assert out.shape == (B, out_dim, in_dim)
    assert jnp.allclose(out, ref, atol=1e-5, rtol=1e-5)

    print("KERNEL_OK")
</pallas_src>

<mosaic_0001>
module attributes {stable_mosaic.version = 11 : i64} {
  func.func @weighted_residual_kernel(%arg0: i32, %arg1: i32, %arg2: memref<2x32xf32, #tpu.memory_space<vmem>>, %arg3: memref<2x8x32xf32, #tpu.memory_space<vmem>>, %arg4: memref<8x32xf32, #tpu.memory_space<vmem>>, %arg5: memref<8x32xf32, #tpu.memory_space<vmem>>, %arg6: memref<2x8x32xf32, #tpu.memory_space<vmem>>) attributes {dimension_semantics = [#tpu.dimension_semantics<parallel>, #tpu.dimension_semantics<parallel>], iteration_bounds = array<i64: 1, 1>, scalar_prefetch = 0 : i64, scratch_operands = 0 : i64, tpu.core_type = #tpu.core_type<tc>, window_params = [{transform_indices = @transform_0, window_bounds = array<i64: 2, 32>}, {transform_indices = @transform_1, window_bounds = array<i64: 2, 8, 32>}, {transform_indices = @transform_2, window_bounds = array<i64: 8, 32>}, {transform_indices = @transform_3, window_bounds = array<i64: 8, 32>}, {transform_indices = @transform_4, window_bounds = array<i64: 2, 8, 32>}]} {
    %c0 = arith.constant 0 : index
    %c0_0 = arith.constant 0 : index
    %0 = vector.load %arg2[%c0, %c0_0] : memref<2x32xf32, #tpu.memory_space<vmem>>, vector<2x32xf32>
    %1 = arith.negf %0 : vector<2x32xf32>
    %2 = math.exp %1 : vector<2x32xf32>
    %cst = arith.constant 1.000000e+00 : f32
    %3 = vector.broadcast %cst : f32 to vector<2x32xf32>
    %4 = arith.addf %3, %2 : vector<2x32xf32>
    %5 = arith.divf %3, %4 : vector<2x32xf32>
    %6 = arith.mulf %0, %5 : vector<2x32xf32>
    %c0_1 = arith.constant 0 : index
    %c0_2 = arith.constant 0 : index
    %7 = vector.load %arg4[%c0_1, %c0_2] : memref<8x32xf32, #tpu.memory_space<vmem>>, vector<8x32xf32>
    %c0_3 = arith.constant 0 : index
    %c0_4 = arith.constant 0 : index
    %8 = vector.load %arg5[%c0_3, %c0_4] : memref<8x32xf32, #tpu.memory_space<vmem>>, vector<8x32xf32>
    %c0_5 = arith.constant 0 : index
    %c0_6 = arith.constant 0 : index
    %c0_7 = arith.constant 0 : index
    %9 = vector.load %arg3[%c0_5, %c0_6, %c0_7] : memref<2x8x32xf32, #tpu.memory_space<vmem>>, vector<2x8x32xf32>
    %10 = vector.shape_cast %7 : vector<8x32xf32> to vector<1x8x32xf32>
    %11 = vector.shape_cast %6 : vector<2x32xf32> to vector<2x1x32xf32>
    %12 = vector.broadcast %10 : vector<1x8x32xf32> to vector<2x8x32xf32>
    %13 = vector.broadcast %11 : vector<2x1x32xf32> to vector<2x8x32xf32>
    %14 = arith.mulf %12, %13 : vector<2x8x32xf32>
    %15 = vector.shape_cast %8 : vector<8x32xf32> to vector<1x8x32xf32>
    %16 = vector.broadcast %15 : vector<1x8x32xf32> to vector<2x8x32xf32>
    %17 = arith.mulf %16, %9 : vector<2x8x32xf32>
    %18 = arith.addf %14, %17 : vector<2x8x32xf32>
    %c0_8 = arith.constant 0 : index
    %c0_9 = arith.constant 0 : index
    %c0_10 = arith.constant 0 : index
    %19 = vector.load %arg6[%c0_8, %c0_9, %c0_10] : memref<2x8x32xf32, #tpu.memory_space<vmem>>, vector<2x8x32xf32>
    tpu.vector_store %arg6[%c0_8, %c0_9, %c0_10], %18 {strides = array<i32>} : memref<2x8x32xf32, #tpu.memory_space<vmem>>, vector<2x8x32xf32>,
    return
  }
  func.func @transform_0(%arg0: i32, %arg1: i32) -> (i32, i32) {
    %c0_i32 = arith.constant 0 : i32
    %c0_i32_0 = arith.constant 0 : i32
    return %arg0, %c0_i32 : i32, i32
  }
  func.func @transform_1(%arg0: i32, %arg1: i32) -> (i32, i32, i32) {
    %c0_i32 = arith.constant 0 : i32
    %c0_i32_0 = arith.constant 0 : i32
    return %arg0, %arg1, %c0_i32 : i32, i32, i32
  }
  func.func @transform_2(%arg0: i32, %arg1: i32) -> (i32, i32) {
    %c0_i32 = arith.constant 0 : i32
    %c0_i32_0 = arith.constant 0 : i32
    return %arg1, %c0_i32 : i32, i32
  }
  func.func @transform_3(%arg0: i32, %arg1: i32) -> (i32, i32) {
    %c0_i32 = arith.constant 0 : i32
    %c0_i32_0 = arith.constant 0 : i32
    return %arg1, %c0_i32 : i32, i32
  }
  func.func @transform_4(%arg0: i32, %arg1: i32) -> (i32, i32, i32) {
    %c0_i32 = arith.constant 0 : i32
    %c0_i32_0 = arith.constant 0 : i32
    return %arg0, %arg1, %c0_i32 : i32, i32, i32
  }
}

</mosaic_0001>

<llo_original>
// kernel: tpu_custom_call.1
$region0: #{tpu_custom_call.1}
  #allocation0 [shape = 'u32[]', space=smem, size = 0x4, offset = 0x4, fixed_abs, tag = 'smem constant byte address 0x4 - core index']
  #allocation1 [shape = 'u32[144,128]{1,0:T(1,128)}', space=vmem, size = 0x12000, scoped, tag = 'internal scratch']
  %s0 = inlined_call_operand.hbm [shape: f32[2,32], index: 0, kind: input, shape index: {}]
  %s1 = inlined_call_operand.hbm [shape: f32[2,8,32], index: 1, kind: input, shape index: {}]
  %s2 = inlined_call_operand.hbm [shape: f32[8,32], index: 2, kind: input, shape index: {}]
  %s3 = inlined_call_operand.vmem [shape: f32[8,32], index: 3, kind: input, shape index: {}]
  %s4 = inlined_call_operand.hbm [shape: f32[2,8,32], index: 4, kind: output, shape index: {}]
  %s5 = sld [smem:[#allocation0]]
  $region38: #{tpu_custom_call.1} parent=0
    _
  %s7 = ssub.s32 1, %s5
  %s8 = scalar_select 0, %s7, %s5
  $region1: #{tpu_custom_call.1} parent=0
    #allocation2 [shape = 'u8[1024]{0}', space=vmem, size = 0x400, scoped, tag = 'input window, operand 0, single buffered']
    #allocation3 [shape = 's32[1]{0}', space=sflag, size = 0x4, scoped, tag = 'scoped memory for tpu_custom_call.1']
    #allocation4 [shape = 's32[1]{0}', space=sflag, size = 0x4, scoped, tag = 'scoped memory for tpu_custom_call.1']
    #allocation5 [shape = 'u8[8192]{0}', space=vmem, size = 0x2000, scoped, tag = 'input window, operand 1, single buffered']
    #allocation6 [shape = 's32[1]{0}', space=sflag, size = 0x4, scoped, tag = 'scoped memory for tpu_custom_call.1']
    #allocation7 [shape = 'u8[4096]{0}', space=vmem, size = 0x1000, scoped, tag = 'input window, operand 2, single buffered']
    #allocation8 [shape = 'u8[8192]{0}', space=vmem, size = 0x2000, scoped, tag = 'output window, operand 0, single buffered']
    %9 = vsyncpa [#allocation3], 0
    %10 = vsyncpa [#allocation6], 0
    %11 = vsyncpa [#allocation4], 0
    // Predicated region
    $region2: #{tpu_custom_call.1} parent=1 // pred_check
      _
    $region3: #{tpu_custom_call.1} parent=1 // pred_check_branch
      %13 = sbr.rel (0) target = $region5
    $region4: #{tpu_custom_call.1} parent=1 // pred_region
      %s15 = ssub.s32 32, 32
      %16 = vsyncadd [#allocation3], %s15
      %s18 = sshll.u32 [#allocation2], 4
      %s19 = int_to_ptr.vmem [resolvable:$true] %s18
      %21 = dma.hbm_to_vmem [thread:$0]  %s0, 32, %s19, [#allocation3]
    $region5: #{tpu_custom_call.1} parent=1 // pred_fallthru
      _
    // Predicated region
    $region6: #{tpu_custom_call.1} parent=1 // pred_check
      _
    $region7: #{tpu_custom_call.1} parent=1 // pred_check_branch
      %23 = sbr.rel (0) target = $region9
    $region8: #{tpu_custom_call.1} parent=1 // pred_region
      %s25 = ssub.s32 256, 256
      %26 = vsyncadd [#allocation6], %s25
      %s27 = sshll.u32 [#allocation5], 4
      %s28 = int_to_ptr.vmem [resolvable:$true] %s27
      %33 = dma.hbm_to_vmem [thread:$0]  %s1, 256, %s28, [#allocation6], 128, 128, 8
    $region9: #{tpu_custom_call.1} parent=1 // pred_fallthru
      _
    // Predicated region
    $region10: #{tpu_custom_call.1} parent=1 // pred_check
      _
    $region11: #{tpu_custom_call.1} parent=1 // pred_check_branch
      %35 = sbr.rel (0) target = $region13
    $region12: #{tpu_custom_call.1} parent=1 // pred_region
      %s37 = ssub.s32 128, 128
      %38 = vsyncadd [#allocation6], %s37
      %s40 = sshll.u32 [#allocation7], 4
      %s41 = int_to_ptr.vmem [resolvable:$true] %s40
      %43 = dma.hbm_to_vmem [thread:$0]  %s2, 128, %s41, [#allocation6]
    $region13: #{tpu_custom_call.1} parent=1 // pred_fallthru
      _
    // Predicated region
    $region14: #{tpu_custom_call.1} parent=1 // pred_check
      _
    $region15: #{tpu_custom_call.1} parent=1 // pred_check_branch
      %45 = sbr.rel (0) target = $region17
    $region16: #{tpu_custom_call.1} parent=1 // pred_region
      _
    $region17: #{tpu_custom_call.1} parent=1 // pred_fallthru
      _
    // Predicated region
    $region18: #{tpu_custom_call.1} parent=1 // pred_check
      _
    $region19: #{tpu_custom_call.1} parent=1 // pred_check_branch
      %47 = sbr.rel (0) target = $region21
    $region20: #{tpu_custom_call.1} parent=1 // pred_region
      %48 = dma.done [#allocation3], 32
    $region21: #{tpu_custom_call.1} parent=1 // pred_fallthru
      _
    // Predicated region
    $region22: #{tpu_custom_call.1} parent=1 // pred_check
      _
    $region23: #{tpu_custom_call.1} parent=1 // pred_check_branch
      %50 = sbr.rel (0) target = $region25
    $region24: #{tpu_custom_call.1} parent=1 // pred_region
      %51 = dma.done [#allocation6], 256
    $region25: #{tpu_custom_call.1} parent=1 // pred_fallthru
      _
    // Predicated region
    $region26: #{tpu_custom_call.1} parent=1 // pred_check
      _
    $region27: #{tpu_custom_call.1} parent=1 // pred_check_branch
      %53 = sbr.rel (0) target = $region29
    $region28: #{tpu_custom_call.1} parent=1 // pred_region
      %54 = dma.done [#allocation6], 128
    $region29: #{tpu_custom_call.1} parent=1 // pred_fallthru
      _
    %v55 = vld [vmem:[#allocation2] sm:$0x3]
    %v56 = vxor.u32 %v55, 2147483648
    %v57 = vmul.f32 %v56, 1.442695
    %v58 = vpow.pop %v57
    %v59 = vadd.f32 %v58, 1.0
    %v60 = vrcp.pop %v59
    %v61 = vmul.f32 1.0, %v60
    %v62 = vmul.f32 %v55, %v61
    %v63 = vld [vmem:[#allocation7] sm:$0xff]
    %v64 = vld [vmem:[%s3] sm:$0xff]
    %v65 = vld [vmem:[#allocation5] sm:$0xff]
    %v66 = vld [vmem:[#allocation5 + $0x8] sm:$0xff]
    %v69 = vunpack.c.l.s4 1966171168
    %v70 = vunpack.c.0.s8 %v69
    %v71 = vlaneseq
    %v72 = vshrl.u32 %v71, 7
    %v73 = vsub.s32 %v70, %v72
    %v74 = vrot.slane %v62, %v73
    %v75 = vcombine.high %v74, %v74
    %v77 = vunpack.c.l.s4 1966171168
    %v78 = vunpack.c.0.s8 %v77
    %v79 = vlaneseq
    %v80 = vshrl.u32 %v79, 7
    %v81 = vsub.s32 %v78, %v80
    %v82 = vrot.slane %v74, %v81
    %v84 = vunpack.c.l.s4 1966171168
    %v85 = vunpack.c.0.s8 %v84
    %v86 = vlaneseq
    %v87 = vshrl.u32 %v86, 7
    %v88 = vsub.s32 %v85, %v87
    %v89 = vrot.slane %v75, %v88
    %v90 = vlaneseq
    %v91 = vshrl.u32 %v90, 7
    %v92 = vsub.s32 0, %v91
    %v93 = vrot.slane %v82, %v92
    %v94 = vlaneseq
    %v95 = vshrl.u32 %v94, 7
    %v96 = vsub.s32 0, %v95
    %v97 = vrot.slane %v89, %v96
    %v100 = vmul.f32 %v63, %v93
    %v101 = vmul.f32 %v63, %v97
    %v102 = vmul.f32 %v64, %v65
    %v103 = vmul.f32 %v64, %v66
    %v104 = vadd.f32 %v100, %v102
    %v105 = vadd.f32 %v101, %v103
    %vm106 = vcmask 261120
    %107 = vst.msk [vmem:[#allocation8] sm:$0xff] %vm106, %v104
    %108 = vst.msk [vmem:[#allocation8 + $0x8] sm:$0xff] %vm106, %v105
    // Predicated region
    $region30: #{tpu_custom_call.1} parent=1 // pred_check
      _
    $region31: #{tpu_custom_call.1} parent=1 // pred_check_branch
      %110 = sbr.rel (0) target = $region33
    $region32: #{tpu_custom_call.1} parent=1 // pred_region
      %s112 = ssub.s32 256, 256
      %113 = vsyncadd [#allocation4], %s112
      %s114 = sshll.u32 [#allocation8], 4
      %s115 = int_to_ptr.vmem [resolvable:$true] %s114
      %120 = dma.vmem_to_hbm [thread:$0]  %s115, 256, %s4, [#allocation4], 128, 128, 8
    $region33: #{tpu_custom_call.1} parent=1 // pred_fallthru
      _
    // Predicated region
    $region34: #{tpu_custom_call.1} parent=1 // pred_check
      _
    $region35: #{tpu_custom_call.1} parent=1 // pred_check_branch
      %122 = sbr.rel (0) target = $region37
    $region36: #{tpu_custom_call.1} parent=1 // pred_region
      %123 = dma.done [#allocation4], 256
    $region37: #{tpu_custom_call.1} parent=1 // pred_fallthru
      _
    %124 = vsyncpa [#allocation3], 1
    %125 = vsyncpa [#allocation6], 1
    %126 = vsyncpa [#allocation4], 1

</llo_original>
